<compile_context>
chip_gen: v7x
topology: tpu7x:2x2x1
jax: 0.10.0
libtpu: 0.0.40
codegen_flags: <defaults>
</compile_context>

<pallas_src>
import jax
import jax.numpy as jnp
from jax.experimental import pallas as pl
from jax.experimental.pallas import tpu as pltpu

# ---- model hyper-parameters (small, consistent with the module) ----
B, S, H = 2, 8, 32          # batch, seq_len, hidden_size
NUM_HEADS = 4
HEAD_DIM = H // NUM_HEADS
FF = 64                     # ff_dim
BS = B * S                  # flattened (batch*seq) rows = 16
NH_BS = NUM_HEADS * BS      # 64: lane width of the block-diagonal score layout
EPS = 1e-5                  # nn.LayerNorm default eps
NEG_INF = -1e30
LANES = 128

# Row offsets inside the packed f32 weight/constant slab (all multiples of 8,
# every block stored at lane offset 0 so in-kernel views need no lane shifts).
ROW_WQ = 0                       # (H, H)   gamma1 & 1/sqrt(hd) folded in
ROW_WK = ROW_WQ + H              # (H, H)   gamma1 folded in
ROW_WV = ROW_WK + H              # (H, H)   gamma1 folded in
ROW_WO = ROW_WV + H              # (H, H)
ROW_W1 = ROW_WO + H              # (H, FF)  gamma2 folded in
ROW_W2 = ROW_W1 + H              # (FF, H)
ROW_SPREAD_K = ROW_W2 + FF       # (BS, NH_BS)   replication matrix for K^T
ROW_SPREAD_V = ROW_SPREAD_K + BS # (NH_BS, BS)   replication matrix for V
ROW_ONES = ROW_SPREAD_V + NH_BS  # (NH_BS, NH_BS) block-ones (softmax denom)
ROW_BIAS = ROW_ONES + NH_BS      # (BS, NH_BS)   additive batch mask 0/-1e30
ROW_KMASK = ROW_BIAS + BS        # (H, NH_BS)    head mask for K^T operand
ROW_VMASK = ROW_KMASK + H        # (NH_BS, H)    head mask for V operand
W_ROWS = ROW_VMASK + NH_BS       # 480 rows total -> 480*128*4 B = 240 KiB


def encoder_layer_kernel(x_ref, w_ref, b_ref, o_ref):
    x = x_ref[...]                                               # [BS, H] f32

    # ---- static, tile-aligned views into the packed slabs (one DMA each) ----
    wq = w_ref[ROW_WQ:ROW_WQ + H, 0:H]
    wk = w_ref[ROW_WK:ROW_WK + H, 0:H]
    wv = w_ref[ROW_WV:ROW_WV + H, 0:H]
    wo = w_ref[ROW_WO:ROW_WO + H, 0:H]
    w1 = w_ref[ROW_W1:ROW_W1 + H, 0:FF]
    w2 = w_ref[ROW_W2:ROW_W2 + FF, 0:H]
    spread_k = w_ref[ROW_SPREAD_K:ROW_SPREAD_K + BS, 0:NH_BS]    # [BS, 64]
    spread_v = w_ref[ROW_SPREAD_V:ROW_SPREAD_V + NH_BS, 0:BS]    # [64, BS]
    ones_bd = w_ref[ROW_ONES:ROW_ONES + NH_BS, 0:NH_BS]          # [64, 64]
    bias_bd = w_ref[ROW_BIAS:ROW_BIAS + BS, 0:NH_BS]             # [BS, 64]
    kmask = w_ref[ROW_KMASK:ROW_KMASK + H, 0:NH_BS]              # [H, 64]
    vmask = w_ref[ROW_VMASK:ROW_VMASK + NH_BS, 0:H]              # [64, H]

    bq = b_ref[0:1, 0:H]
    bk = b_ref[1:2, 0:H]
    bv = b_ref[2:3, 0:H]
    bo = b_ref[3:4, 0:H]
    b1 = b_ref[4:5, 0:FF]
    b2 = b_ref[5:6, 0:H]

    # ---- norm1 (gamma/beta folded into the Q/K/V weights & biases) ----
    mu = jnp.mean(x, axis=-1, keepdims=True)
    xc = x - mu
    z1 = xc * jax.lax.rsqrt(jnp.mean(xc * xc, axis=-1, keepdims=True) + EPS)

    # ---- Q/K/V projections (1/sqrt(head_dim) folded into Q) ----
    q = jnp.dot(z1, wq, preferred_element_type=jnp.float32) + bq   # [BS, H]
    k = jnp.dot(z1, wk, preferred_element_type=jnp.float32) + bk   # [BS, H]
    v = jnp.dot(z1, wv, preferred_element_type=jnp.float32) + bv   # [BS, H]

    # ---- block-diagonal multi-head attention, lane-major throughout ----
    # KTbd[d, h*BS+key] = K[key, d] if head(d)==h else 0         -> [H, 64]
    kt_bd = jnp.dot(k.T, spread_k, preferred_element_type=jnp.float32) * kmask
    # scores[q, h*BS+key] = <Q_h[q], K_h[key]> + batch mask       -> [BS, 64]
    scores = jnp.dot(q, kt_bd, preferred_element_type=jnp.float32) + bias_bd
    # per-row global max is a valid shift for every per-head softmax segment
    m = jnp.max(scores, axis=-1, keepdims=True)
    e = jnp.exp(scores - m)
    # per-head denominators, broadcast back across each 16-col segment (MXU)
    denom = jnp.dot(e, ones_bd, preferred_element_type=jnp.float32)
    p = e / denom                                                  # exact softmax
    # Vbd[h*BS+key, d] = V[key, d] if head(d)==h else 0           -> [64, H]
    v_bd = jnp.dot(spread_v, v, preferred_element_type=jnp.float32) * vmask
    ctx = jnp.dot(p, v_bd, preferred_element_type=jnp.float32)     # [BS, H], heads already concatenated
    attn = jnp.dot(ctx, wo, preferred_element_type=jnp.float32) + bo
    x1 = x + attn                       # residual (dropout = identity in eval)

    # ---- norm2 (affine folded into W1/b1) + feed-forward ----
    mu2 = jnp.mean(x1, axis=-1, keepdims=True)
    xc2 = x1 - mu2
    z2 = xc2 * jax.lax.rsqrt(jnp.mean(xc2 * xc2, axis=-1, keepdims=True) + EPS)
    h1 = jnp.maximum(jnp.dot(z2, w1, preferred_element_type=jnp.float32) + b1, 0.0)
    ff = jnp.dot(h1, w2, preferred_element_type=jnp.float32) + b2

    o_ref[...] = x1 + ff                # residual (dropout = identity in eval)


def make_params(key):
    """Deterministic synthetic parameters (PyTorch-convention shapes)."""
    ks = jax.random.split(key, 8)
    s = 0.05
    return {
        "in_proj_w": jax.random.normal(ks[0], (3 * H, H), jnp.float32) * s,
        "in_proj_b": jax.random.normal(ks[1], (3 * H,), jnp.float32) * s,
        "out_proj_w": jax.random.normal(ks[2], (H, H), jnp.float32) * s,
        "out_proj_b": jax.random.normal(ks[3], (H,), jnp.float32) * s,
        "w1": jax.random.normal(ks[4], (FF, H), jnp.float32) * s,   # Linear(H->FF)
        "b1": jax.random.normal(ks[5], (FF,), jnp.float32) * s,
        "w2": jax.random.normal(ks[6], (H, FF), jnp.float32) * s,   # Linear(FF->H)
        "b2": jax.random.normal(ks[7], (H,), jnp.float32) * s,
        "g1": jnp.ones((H,), jnp.float32),
        "be1": jnp.zeros((H,), jnp.float32),
        "g2": jnp.ones((H,), jnp.float32),
        "be2": jnp.zeros((H,), jnp.float32),
    }


def prepare_params(params):
    """One-time preprocessing: weight transposes, LayerNorm-affine and
    attention-scale folding, precomputed block-diagonal spread/mask matrices,
    and packing of everything into two DMA-friendly slabs."""
    scale = 1.0 / (HEAD_DIM ** 0.5)
    g1, be1 = params["g1"], params["be1"]
    g2, be2 = params["g2"], params["be2"]
    ipw, ipb = params["in_proj_w"], params["in_proj_b"]

    def fold_ln(W, b, g, be):
        # (z*g + be) @ W + b  ==  z @ (g[:,None]*W) + (be @ W + b)
        return g[:, None] * W, be @ W + b

    wq, bq = fold_ln(ipw[0:H].T, ipb[0:H], g1, be1)
    wk, bk = fold_ln(ipw[H:2 * H].T, ipb[H:2 * H], g1, be1)
    wv, bv = fold_ln(ipw[2 * H:].T, ipb[2 * H:], g1, be1)
    wq, bq = wq * scale, bq * scale                       # fold 1/sqrt(head_dim)
    wo, bo = params["out_proj_w"].T, params["out_proj_b"]
    w1, b1 = fold_ln(params["w1"].T, params["b1"], g2, be2)
    w2, b2 = params["w2"].T, params["b2"]

    # Constant matrices for the block-diagonal attention layout.
    rbs = jnp.arange(BS)
    rh = jnp.arange(H)
    rnb = jnp.arange(NH_BS)
    spread_k = (rnb[None, :] % BS == rbs[:, None]).astype(jnp.float32)        # [BS, 64]
    spread_v = (rnb[:, None] % BS == rbs[None, :]).astype(jnp.float32)        # [64, BS]
    ones_bd = (rnb[:, None] // BS == rnb[None, :] // BS).astype(jnp.float32)  # [64, 64]
    bias_bd = jnp.where(rbs[:, None] // S == (rnb[None, :] % BS) // S,
                        0.0, NEG_INF).astype(jnp.float32)                     # [BS, 64]
    kmask = (rh[:, None] // HEAD_DIM == rnb[None, :] // BS).astype(jnp.float32)   # [H, 64]
    vmask = (rnb[:, None] // BS == rh[None, :] // HEAD_DIM).astype(jnp.float32)   # [64, H]

    wslab = jnp.zeros((W_ROWS, LANES), jnp.float32)
    for r0, blk in ((ROW_WQ, wq), (ROW_WK, wk), (ROW_WV, wv), (ROW_WO, wo),
                    (ROW_W1, w1), (ROW_W2, w2), (ROW_SPREAD_K, spread_k),
                    (ROW_SPREAD_V, spread_v), (ROW_ONES, ones_bd),
                    (ROW_BIAS, bias_bd), (ROW_KMASK, kmask), (ROW_VMASK, vmask)):
        r, c = blk.shape
        wslab = wslab.at[r0:r0 + r, 0:c].set(blk)

    bslab = jnp.zeros((8, LANES), jnp.float32)
    for i, vec in enumerate((bq, bk, bv, bo, b1, b2)):
        bslab = bslab.at[i, 0:vec.shape[0]].set(vec)

    return {"wslab": wslab, "bslab": bslab}


@jax.jit
def encoder_layer(x, p):
    args = (x.reshape(BS, H), p["wslab"], p["bslab"])
    vmem = pl.BlockSpec(memory_space=pltpu.MemorySpace.VMEM)

    flops = (3 * 2 * BS * H * H           # Q/K/V projections
             + 2 * H * BS * NH_BS         # K^T replication matmul
             + 2 * BS * H * NH_BS         # scores
             + 2 * BS * NH_BS * NH_BS     # per-head softmax denominators
             + 2 * NH_BS * BS * H         # V replication matmul
             + 2 * BS * NH_BS * H         # context
             + 2 * BS * H * H             # output projection
             + 4 * BS * H * FF)           # FFN
    transcendentals = BS * NH_BS + 3 * BS
    bytes_accessed = sum(a.size * a.dtype.itemsize for a in args) + BS * H * 4

    out = pl.pallas_call(
        encoder_layer_kernel,
        out_shape=jax.ShapeDtypeStruct((BS, H), jnp.float32),
        in_specs=[vmem] * len(args),
        out_specs=vmem,
        cost_estimate=pl.CostEstimate(
            flops=flops,
            transcendentals=transcendentals,
            bytes_accessed=bytes_accessed,
        ),
    )(*args)
    return out.reshape(B, S, H)


if __name__ == "__main__":
    key = jax.random.PRNGKey(0)
    k_x, k_p = jax.random.split(key)
    x = jax.random.normal(k_x, (B, S, H), jnp.float32)
    params = make_params(k_p)
    prepped = prepare_params(params)     # one-time parameter/constant packing

    out = encoder_layer(x, prepped)
    jax.block_until_ready(out)
    assert out.shape == (B, S, H)
    print("KERNEL_OK")
</pallas_src>

<mosaic_0001>
module attributes {stable_mosaic.version = 11 : i64} {
  func.func @encoder_layer_kernel(%arg0: memref<16x32xf32, #tpu.memory_space<vmem>>, %arg1: memref<480x128xf32, #tpu.memory_space<vmem>>, %arg2: memref<8x128xf32, #tpu.memory_space<vmem>>, %arg3: memref<16x32xf32, #tpu.memory_space<vmem>>) attributes {dimension_semantics = [], scalar_prefetch = 0 : i64, scratch_operands = 0 : i64, tpu.core_type = #tpu.core_type<tc>} {
    %c0 = arith.constant 0 : index
    %c0_0 = arith.constant 0 : index
    %0 = vector.load %arg0[%c0, %c0_0] : memref<16x32xf32, #tpu.memory_space<vmem>>, vector<16x32xf32>
    %c0_1 = arith.constant 0 : index
    %c0_2 = arith.constant 0 : index
    %1 = vector.load %arg1[%c0_1, %c0_2] : memref<480x128xf32, #tpu.memory_space<vmem>>, vector<32x32xf32>
    %c32 = arith.constant 32 : index
    %c0_3 = arith.constant 0 : index
    %2 = vector.load %arg1[%c32, %c0_3] : memref<480x128xf32, #tpu.memory_space<vmem>>, vector<32x32xf32>
    %c64 = arith.constant 64 : index
    %c0_4 = arith.constant 0 : index
    %3 = vector.load %arg1[%c64, %c0_4] : memref<480x128xf32, #tpu.memory_space<vmem>>, vector<32x32xf32>
    %c96 = arith.constant 96 : index
    %c0_5 = arith.constant 0 : index
    %4 = vector.load %arg1[%c96, %c0_5] : memref<480x128xf32, #tpu.memory_space<vmem>>, vector<32x32xf32>
    %c128 = arith.constant 128 : index
    %c0_6 = arith.constant 0 : index
    %5 = vector.load %arg1[%c128, %c0_6] : memref<480x128xf32, #tpu.memory_space<vmem>>, vector<32x64xf32>
    %c160 = arith.constant 160 : index
    %c0_7 = arith.constant 0 : index
    %6 = vector.load %arg1[%c160, %c0_7] : memref<480x128xf32, #tpu.memory_space<vmem>>, vector<64x32xf32>
    %c224 = arith.constant 224 : index
    %c0_8 = arith.constant 0 : index
    %7 = vector.load %arg1[%c224, %c0_8] : memref<480x128xf32, #tpu.memory_space<vmem>>, vector<16x64xf32>
    %c240 = arith.constant 240 : index
    %c0_9 = arith.constant 0 : index
    %8 = vector.load %arg1[%c240, %c0_9] : memref<480x128xf32, #tpu.memory_space<vmem>>, vector<64x16xf32>
    %c304 = arith.constant 304 : index
    %c0_10 = arith.constant 0 : index
    %9 = vector.load %arg1[%c304, %c0_10] : memref<480x128xf32, #tpu.memory_space<vmem>>, vector<64x64xf32>
    %c368 = arith.constant 368 : index
    %c0_11 = arith.constant 0 : index
    %10 = vector.load %arg1[%c368, %c0_11] : memref<480x128xf32, #tpu.memory_space<vmem>>, vector<16x64xf32>
    %c384 = arith.constant 384 : index
    %c0_12 = arith.constant 0 : index
    %11 = vector.load %arg1[%c384, %c0_12] : memref<480x128xf32, #tpu.memory_space<vmem>>, vector<32x64xf32>
    %c416 = arith.constant 416 : index
    %c0_13 = arith.constant 0 : index
    %12 = vector.load %arg1[%c416, %c0_13] : memref<480x128xf32, #tpu.memory_space<vmem>>, vector<64x32xf32>
    %c0_14 = arith.constant 0 : index
    %c0_15 = arith.constant 0 : index
    %13 = vector.load %arg2[%c0_14, %c0_15] : memref<8x128xf32, #tpu.memory_space<vmem>>, vector<1x32xf32>
    %c1 = arith.constant 1 : index
    %c0_16 = arith.constant 0 : index
    %14 = vector.load %arg2[%c1, %c0_16] : memref<8x128xf32, #tpu.memory_space<vmem>>, vector<1x32xf32>
    %c2 = arith.constant 2 : index
    %c0_17 = arith.constant 0 : index
    %15 = vector.load %arg2[%c2, %c0_17] : memref<8x128xf32, #tpu.memory_space<vmem>>, vector<1x32xf32>
    %c3 = arith.constant 3 : index
    %c0_18 = arith.constant 0 : index
    %16 = vector.load %arg2[%c3, %c0_18] : memref<8x128xf32, #tpu.memory_space<vmem>>, vector<1x32xf32>
    %c4 = arith.constant 4 : index
    %c0_19 = arith.constant 0 : index
    %17 = vector.load %arg2[%c4, %c0_19] : memref<8x128xf32, #tpu.memory_space<vmem>>, vector<1x64xf32>
    %c5 = arith.constant 5 : index
    %c0_20 = arith.constant 0 : index
    %18 = vector.load %arg2[%c5, %c0_20] : memref<8x128xf32, #tpu.memory_space<vmem>>, vector<1x32xf32>
    %cst = arith.constant dense<0.000000e+00> : vector<16xf32>
    %19 = vector.multi_reduction <add>, %0, %cst [1] : vector<16x32xf32> to vector<16xf32>
    %20 = vector.shape_cast %19 : vector<16xf32> to vector<16x1xf32>
    %cst_21 = arith.constant 3.200000e+01 : f32
    %21 = vector.broadcast %cst_21 : f32 to vector<16x1xf32>
    %22 = arith.divf %20, %21 : vector<16x1xf32>
    %23 = vector.broadcast %22 : vector<16x1xf32> to vector<16x32xf32>
    %24 = arith.subf %0, %23 : vector<16x32xf32>
    %25 = arith.mulf %24, %24 : vector<16x32xf32>
    %cst_22 = arith.constant dense<0.000000e+00> : vector<16xf32>
    %26 = vector.multi_reduction <add>, %25, %cst_22 [1] : vector<16x32xf32> to vector<16xf32>
    %27 = vector.shape_cast %26 : vector<16xf32> to vector<16x1xf32>
    %cst_23 = arith.constant 3.200000e+01 : f32
    %28 = vector.broadcast %cst_23 : f32 to vector<16x1xf32>
    %29 = arith.divf %27, %28 : vector<16x1xf32>
    %cst_24 = arith.constant 9.99999974E-6 : f32
    %30 = vector.broadcast %cst_24 : f32 to vector<16x1xf32>
    %31 = arith.addf %29, %30 : vector<16x1xf32>
    %32 = math.rsqrt %31 : vector<16x1xf32>
    %33 = vector.broadcast %32 : vector<16x1xf32> to vector<16x32xf32>
    %34 = arith.mulf %24, %33 : vector<16x32xf32>
    %cst_25 = arith.constant dense<0.000000e+00> : vector<16x32xf32>
    %35 = tpu.matmul %34, %1, %cst_25 {dimension_numbers = #tpu.dot_dimension_numbers<[1], [0], [0], [1], [0, 0, 1, 1], [], []>} : vector<16x32xf32>, vector<32x32xf32>, vector<16x32xf32> -> vector<16x32xf32>
    %36 = vector.broadcast %13 : vector<1x32xf32> to vector<16x32xf32>
    %37 = arith.addf %35, %36 : vector<16x32xf32>
    %cst_26 = arith.constant dense<0.000000e+00> : vector<16x32xf32>
    %38 = tpu.matmul %34, %2, %cst_26 {dimension_numbers = #tpu.dot_dimension_numbers<[1], [0], [0], [1], [0, 0, 1, 1], [], []>} : vector<16x32xf32>, vector<32x32xf32>, vector<16x32xf32> -> vector<16x32xf32>
    %39 = vector.broadcast %14 : vector<1x32xf32> to vector<16x32xf32>
    %40 = arith.addf %38, %39 : vector<16x32xf32>
    %cst_27 = arith.constant dense<0.000000e+00> : vector<16x32xf32>
    %41 = tpu.matmul %34, %3, %cst_27 {dimension_numbers = #tpu.dot_dimension_numbers<[1], [0], [0], [1], [0, 0, 1, 1], [], []>} : vector<16x32xf32>, vector<32x32xf32>, vector<16x32xf32> -> vector<16x32xf32>
    %42 = vector.broadcast %15 : vector<1x32xf32> to vector<16x32xf32>
    %43 = arith.addf %41, %42 : vector<16x32xf32>
    %44 = tpu.transpose %40, [1, 0] : vector<16x32xf32> -> vector<32x16xf32>
    %cst_28 = arith.constant dense<0.000000e+00> : vector<32x64xf32>
    %45 = tpu.matmul %44, %7, %cst_28 {dimension_numbers = #tpu.dot_dimension_numbers<[1], [0], [0], [1], [0, 0, 1, 1], [], []>} : vector<32x16xf32>, vector<16x64xf32>, vector<32x64xf32> -> vector<32x64xf32>
    %46 = arith.mulf %45, %11 : vector<32x64xf32>
    %cst_29 = arith.constant dense<0.000000e+00> : vector<16x64xf32>
    %47 = tpu.matmul %37, %46, %cst_29 {dimension_numbers = #tpu.dot_dimension_numbers<[1], [0], [0], [1], [0, 0, 1, 1], [], []>} : vector<16x32xf32>, vector<32x64xf32>, vector<16x64xf32> -> vector<16x64xf32>
    %48 = arith.addf %47, %10 : vector<16x64xf32>
    %cst_30 = arith.constant dense<0xFF800000> : vector<16xf32>
    %49 = vector.multi_reduction <maximumf>, %48, %cst_30 [1] : vector<16x64xf32> to vector<16xf32>
    %50 = vector.shape_cast %49 : vector<16xf32> to vector<16x1xf32>
    %51 = vector.broadcast %50 : vector<16x1xf32> to vector<16x64xf32>
    %52 = arith.subf %48, %51 : vector<16x64xf32>
    %53 = math.exp %52 : vector<16x64xf32>
    %cst_31 = arith.constant dense<0.000000e+00> : vector<16x64xf32>
    %54 = tpu.matmul %53, %9, %cst_31 {dimension_numbers = #tpu.dot_dimension_numbers<[1], [0], [0], [1], [0, 0, 1, 1], [], []>} : vector<16x64xf32>, vector<64x64xf32>, vector<16x64xf32> -> vector<16x64xf32>
    %55 = arith.divf %53, %54 : vector<16x64xf32>
    %cst_32 = arith.constant dense<0.000000e+00> : vector<64x32xf32>
    %56 = tpu.matmul %8, %43, %cst_32 {dimension_numbers = #tpu.dot_dimension_numbers<[1], [0], [0], [1], [0, 0, 1, 1], [], []>} : vector<64x16xf32>, vector<16x32xf32>, vector<64x32xf32> -> vector<64x32xf32>
    %57 = arith.mulf %56, %12 : vector<64x32xf32>
    %cst_33 = arith.constant dense<0.000000e+00> : vector<16x32xf32>
    %58 = tpu.matmul %55, %57, %cst_33 {dimension_numbers = #tpu.dot_dimension_numbers<[1], [0], [0], [1], [0, 0, 1, 1], [], []>} : vector<16x64xf32>, vector<64x32xf32>, vector<16x32xf32> -> vector<16x32xf32>
    %cst_34 = arith.constant dense<0.000000e+00> : vector<16x32xf32>
    %59 = tpu.matmul %58, %4, %cst_34 {dimension_numbers = #tpu.dot_dimension_numbers<[1], [0], [0], [1], [0, 0, 1, 1], [], []>} : vector<16x32xf32>, vector<32x32xf32>, vector<16x32xf32> -> vector<16x32xf32>
    %60 = vector.broadcast %16 : vector<1x32xf32> to vector<16x32xf32>
    %61 = arith.addf %59, %60 : vector<16x32xf32>
    %62 = arith.addf %0, %61 : vector<16x32xf32>
    %cst_35 = arith.constant dense<0.000000e+00> : vector<16xf32>
    %63 = vector.multi_reduction <add>, %62, %cst_35 [1] : vector<16x32xf32> to vector<16xf32>
    %64 = vector.shape_cast %63 : vector<16xf32> to vector<16x1xf32>
    %cst_36 = arith.constant 3.200000e+01 : f32
    %65 = vector.broadcast %cst_36 : f32 to vector<16x1xf32>
    %66 = arith.divf %64, %65 : vector<16x1xf32>
    %67 = vector.broadcast %66 : vector<16x1xf32> to vector<16x32xf32>
    %68 = arith.subf %62, %67 : vector<16x32xf32>
    %69 = arith.mulf %68, %68 : vector<16x32xf32>
    %cst_37 = arith.constant dense<0.000000e+00> : vector<16xf32>
    %70 = vector.multi_reduction <add>, %69, %cst_37 [1] : vector<16x32xf32> to vector<16xf32>
    %71 = vector.shape_cast %70 : vector<16xf32> to vector<16x1xf32>
    %cst_38 = arith.constant 3.200000e+01 : f32
    %72 = vector.broadcast %cst_38 : f32 to vector<16x1xf32>
    %73 = arith.divf %71, %72 : vector<16x1xf32>
    %cst_39 = arith.constant 9.99999974E-6 : f32
    %74 = vector.broadcast %cst_39 : f32 to vector<16x1xf32>
    %75 = arith.addf %73, %74 : vector<16x1xf32>
    %76 = math.rsqrt %75 : vector<16x1xf32>
    %77 = vector.broadcast %76 : vector<16x1xf32> to vector<16x32xf32>
    %78 = arith.mulf %68, %77 : vector<16x32xf32>
    %cst_40 = arith.constant dense<0.000000e+00> : vector<16x64xf32>
    %79 = tpu.matmul %78, %5, %cst_40 {dimension_numbers = #tpu.dot_dimension_numbers<[1], [0], [0], [1], [0, 0, 1, 1], [], []>} : vector<16x32xf32>, vector<32x64xf32>, vector<16x64xf32> -> vector<16x64xf32>
    %80 = vector.broadcast %17 : vector<1x64xf32> to vector<16x64xf32>
    %81 = arith.addf %79, %80 : vector<16x64xf32>
    %cst_41 = arith.constant 0.000000e+00 : f32
    %82 = vector.broadcast %cst_41 : f32 to vector<16x64xf32>
    %83 = arith.maximumf %81, %82 : vector<16x64xf32>
    %cst_42 = arith.constant dense<0.000000e+00> : vector<16x32xf32>
    %84 = tpu.matmul %83, %6, %cst_42 {dimension_numbers = #tpu.dot_dimension_numbers<[1], [0], [0], [1], [0, 0, 1, 1], [], []>} : vector<16x64xf32>, vector<64x32xf32>, vector<16x32xf32> -> vector<16x32xf32>
    %85 = vector.broadcast %18 : vector<1x32xf32> to vector<16x32xf32>
    %86 = arith.addf %84, %85 : vector<16x32xf32>
    %87 = arith.addf %62, %86 : vector<16x32xf32>
    %c0_43 = arith.constant 0 : index
    %c0_44 = arith.constant 0 : index
    %88 = vector.load %arg3[%c0_43, %c0_44] : memref<16x32xf32, #tpu.memory_space<vmem>>, vector<16x32xf32>
    tpu.vector_store %arg3[%c0_43, %c0_44], %87 {strides = array<i32>} : memref<16x32xf32, #tpu.memory_space<vmem>>, vector<16x32xf32>,
    return
  }
}

</mosaic_0001>

<llo_original>
// kernel: encoder_layer.1
$region0: #{encoder_layer.1}
  #allocation0 [shape = 'u32[]', space=smem, size = 0x4, offset = 0x4, fixed_abs, tag = 'smem constant byte address 0x4 - core index']
  #allocation1 [shape = 'u32[144,128]{1,0:T(1,128)}', space=vmem, size = 0x12000, scoped, tag = 'internal scratch']
  %s0 = inlined_call_operand.hbm [shape: f32[16,32], index: 0, kind: input, shape index: {}]
  %s1 = inlined_call_operand.hbm [shape: f32[480,128], index: 1, kind: input, shape index: {}]
  %s2 = inlined_call_operand.hbm [shape: f32[8,128], index: 2, kind: input, shape index: {}]
  %s3 = inlined_call_operand.hbm [shape: f32[16,32], index: 3, kind: output, shape index: {}]
  %s4 = sld [smem:[#allocation0]]
  $region34: #{encoder_layer.1} parent=0
    _
  %s6 = ssub.s32 1, %s4
  %s7 = scalar_select 0, %s6, %s4
  $region1: #{encoder_layer.1} parent=0
    #allocation2 [shape = 'u8[8192]{0}', space=vmem, size = 0x2000, scoped, tag = 'input window, operand 0, single buffered']
    #allocation3 [shape = 's32[1]{0}', space=sflag, size = 0x4, scoped, tag = 'scoped memory for encoder_layer.1']
    #allocation4 [shape = 's32[1]{0}', space=sflag, size = 0x4, scoped, tag = 'scoped memory for encoder_layer.1']
    #allocation5 [shape = 'u8[245760]{0}', space=vmem, size = 0x3c000, scoped, tag = 'input window, operand 1, single buffered']
    #allocation6 [shape = 's32[1]{0}', space=sflag, size = 0x4, scoped, tag = 'scoped memory for encoder_layer.1']
    #allocation7 [shape = 'u8[4096]{0}', space=vmem, size = 0x1000, scoped, tag = 'input window, operand 2, single buffered']
    #allocation8 [shape = 'u8[8192]{0}', space=vmem, size = 0x2000, scoped, tag = 'output window, operand 0, single buffered']
    %8 = vsyncpa [#allocation3], 0
    %9 = vsyncpa [#allocation6], 0
    %10 = vsyncpa [#allocation4], 0
    // Predicated region
    $region2: #{encoder_layer.1} parent=1 // pred_check
      _
    $region3: #{encoder_layer.1} parent=1 // pred_check_branch
      %12 = sbr.rel (0) target = $region5
    $region4: #{encoder_layer.1} parent=1 // pred_region
      %s14 = ssub.s32 256, 256
      %15 = vsyncadd [#allocation3], %s14
      %s16 = sshll.u32 [#allocation2], 4
      %s17 = int_to_ptr.vmem [resolvable:$true] %s16
      %22 = dma.hbm_to_vmem [thread:$0]  %s0, 256, %s17, [#allocation3], 128, 128, 8
    $region5: #{encoder_layer.1} parent=1 // pred_fallthru
      _
    // Predicated region
    $region6: #{encoder_layer.1} parent=1 // pred_check
      _
    $region7: #{encoder_layer.1} parent=1 // pred_check_branch
      %24 = sbr.rel (0) target = $region9
    $region8: #{encoder_layer.1} parent=1 // pred_region
      %s26 = ssub.s32 7680, 7680
      %27 = vsyncadd [#allocation6], %s26
      %s28 = sshll.u32 [#allocation5], 4
      %s29 = int_to_ptr.vmem [resolvable:$true] %s28
      %34 = dma.hbm_to_vmem [thread:$0]  %s1, 7680, %s29, [#allocation6], 128, 128, 8
    $region9: #{encoder_layer.1} parent=1 // pred_fallthru
      _
    // Predicated region
    $region10: #{encoder_layer.1} parent=1 // pred_check
      _
    $region11: #{encoder_layer.1} parent=1 // pred_check_branch
      %36 = sbr.rel (0) target = $region13
    $region12: #{encoder_layer.1} parent=1 // pred_region
      %s38 = ssub.s32 128, 128
      %39 = vsyncadd [#allocation6], %s38
      %s41 = sshll.u32 [#allocation7], 4
      %s42 = int_to_ptr.vmem [resolvable:$true] %s41
      %44 = dma.hbm_to_vmem [thread:$0]  %s2, 128, %s42, [#allocation6]
    $region13: #{encoder_layer.1} parent=1 // pred_fallthru
      _
    // Predicated region
    $region14: #{encoder_layer.1} parent=1 // pred_check
      _
    $region15: #{encoder_layer.1} parent=1 // pred_check_branch
      %46 = sbr.rel (0) target = $region17
    $region16: #{encoder_layer.1} parent=1 // pred_region
      %47 = dma.done [#allocation3], 256
    $region17: #{encoder_layer.1} parent=1 // pred_fallthru
      _
    // Predicated region
    $region18: #{encoder_layer.1} parent=1 // pred_check
      _
    $region19: #{encoder_layer.1} parent=1 // pred_check_branch
      %49 = sbr.rel (0) target = $region21
    $region20: #{encoder_layer.1} parent=1 // pred_region
      %50 = dma.done [#allocation6], 7680
    $region21: #{encoder_layer.1} parent=1 // pred_fallthru
      _
    // Predicated region
    $region22: #{encoder_layer.1} parent=1 // pred_check
      _
    $region23: #{encoder_layer.1} parent=1 // pred_check_branch
      %52 = sbr.rel (0) target = $region25
    $region24: #{encoder_layer.1} parent=1 // pred_region
      %53 = dma.done [#allocation6], 128
    $region25: #{encoder_layer.1} parent=1 // pred_fallthru
      _
    %v54 = vld [vmem:[#allocation2] sm:$0xff]
    %v55 = vld [vmem:[#allocation2 + $0x8] sm:$0xff]
    %v56 = vld [vmem:[#allocation5] sm:$0xff]
    %v57 = vld [vmem:[#allocation5 + $0x8] sm:$0xff]
    %v58 = vld [vmem:[#allocation5 + $0x10] sm:$0xff]
    %v59 = vld [vmem:[#allocation5 + $0x18] sm:$0xff]
    %v60 = vld [vmem:[#allocation5 + $0x20] sm:$0xff]
    %v61 = vld [vmem:[#allocation5 + $0x28] sm:$0xff]
    %v62 = vld [vmem:[#allocation5 + $0x30] sm:$0xff]
    %v63 = vld [vmem:[#allocation5 + $0x38] sm:$0xff]
    %v64 = vld [vmem:[#allocation5 + $0x40] sm:$0xff]
    %v65 = vld [vmem:[#allocation5 + $0x48] sm:$0xff]
    %v66 = vld [vmem:[#allocation5 + $0x50] sm:$0xff]
    %v67 = vld [vmem:[#allocation5 + $0x58] sm:$0xff]
    %v68 = vld [vmem:[#allocation5 + $0x60] sm:$0xff]
    %v69 = vld [vmem:[#allocation5 + $0x68] sm:$0xff]
    %v70 = vld [vmem:[#allocation5 + $0x70] sm:$0xff]
    %v71 = vld [vmem:[#allocation5 + $0x78] sm:$0xff]
    %v72 = vld [vmem:[#allocation5 + $0x80] sm:$0xff]
    %v73 = vld [vmem:[#allocation5 + $0x88] sm:$0xff]
    %v74 = vld [vmem:[#allocation5 + $0x90] sm:$0xff]
    %v75 = vld [vmem:[#allocation5 + $0x98] sm:$0xff]
    %v76 = vld [vmem:[#allocation5 + $0xa0] sm:$0xff]
    %v77 = vld [vmem:[#allocation5 + $0xa8] sm:$0xff]
    %v78 = vld [vmem:[#allocation5 + $0xb0] sm:$0xff]
    %v79 = vld [vmem:[#allocation5 + $0xb8] sm:$0xff]
    %v80 = vld [vmem:[#allocation5 + $0xc0] sm:$0xff]
    %v81 = vld [vmem:[#allocation5 + $0xc8] sm:$0xff]
    %v82 = vld [vmem:[#allocation5 + $0xd0] sm:$0xff]
    %v83 = vld [vmem:[#allocation5 + $0xd8] sm:$0xff]
    %v84 = vld [vmem:[#allocation5 + $0xe0] sm:$0xff]
    %v85 = vld [vmem:[#allocation5 + $0xe8] sm:$0xff]
    %v86 = vld [vmem:[#allocation5 + $0xf0] sm:$0xff]
    %v87 = vld [vmem:[#allocation5 + $0xf8] sm:$0xff]
    %v88 = vld [vmem:[#allocation5 + $0x100] sm:$0xff]
    %v89 = vld [vmem:[#allocation5 + $0x108] sm:$0xff]
    %v90 = vld [vmem:[#allocation5 + $0x110] sm:$0xff]
    %v91 = vld [vmem:[#allocation5 + $0x118] sm:$0xff]
    %v92 = vld [vmem:[#allocation5 + $0x120] sm:$0xff]
    %v93 = vld [vmem:[#allocation5 + $0x128] sm:$0xff]
    %v94 = vld [vmem:[#allocation5 + $0x130] sm:$0xff]
    %v95 = vld [vmem:[#allocation5 + $0x138] sm:$0xff]
    %v96 = vld [vmem:[#allocation5 + $0x140] sm:$0xff]
    %v97 = vld [vmem:[#allocation5 + $0x148] sm:$0xff]
    %v98 = vld [vmem:[#allocation5 + $0x150] sm:$0xff]
    %v99 = vld [vmem:[#allocation5 + $0x158] sm:$0xff]
    %v100 = vld [vmem:[#allocation5 + $0x160] sm:$0xff]
    %v101 = vld [vmem:[#allocation5 + $0x168] sm:$0xff]
    %v102 = vld [vmem:[#allocation5 + $0x170] sm:$0xff]
    %v103 = vld [vmem:[#allocation5 + $0x178] sm:$0xff]
    %v104 = vld [vmem:[#allocation5 + $0x180] sm:$0xff]
    %v105 = vld [vmem:[#allocation5 + $0x188] sm:$0xff]
    %v106 = vld [vmem:[#allocation5 + $0x190] sm:$0xff]
    %v107 = vld [vmem:[#allocation5 + $0x198] sm:$0xff]
    %v108 = vld [vmem:[#allocation5 + $0x1a0] sm:$0xff]
    %v109 = vld [vmem:[#allocation5 + $0x1a8] sm:$0xff]
    %v110 = vld [vmem:[#allocation5 + $0x1b0] sm:$0xff]
    %v111 = vld [vmem:[#allocation5 + $0x1b8] sm:$0xff]
    %v112 = vld [vmem:[#allocation5 + $0x1c0] sm:$0xff]
    %v113 = vld [vmem:[#allocation5 + $0x1c8] sm:$0xff]
    %v114 = vld [vmem:[#allocation5 + $0x1d0] sm:$0xff]
    %v115 = vld [vmem:[#allocation5 + $0x1d8] sm:$0xff]
    %v116 = vld [vmem:[#allocation7] sm:$0x1]
    %v117 = vld [vmem:[#allocation7 + $0x1] sm:$0x1]
    %v118 = vld [vmem:[#allocation7 + $0x2] sm:$0x1]
    %v119 = vld [vmem:[#allocation7 + $0x3] sm:$0x1]
    %v120 = vld [vmem:[#allocation7 + $0x4] sm:$0x1]
    %v121 = vld [vmem:[#allocation7 + $0x5] sm:$0x1]
    %vm122 = vcmask 261120
    %v123 = vsel %vm122, %v54, 0.0
    %124 = vadd.xlane.f32.xlu0 %v123
    %v125 = vpop.xlane.xlu0 %124
    %v126 = vsel %vm122, %v55, 0.0
    %127 = vadd.xlane.f32.xlu0 %v126
    %v128 = vpop.xlane.xlu0 %127
    %v129 = vrcp.pop 32.0
    %v130 = vmul.f32 %v125, %v129
    %v131 = vmul.f32 %v128, %v129
    %v132 = vsub.f32 %v54, %v130
    %v133 = vsub.f32 %v55, %v131
    %v134 = vmul.f32 %v132, %v132
    %v135 = vmul.f32 %v133, %v133
    %v136 = vsel %vm122, %v134, 0.0
    %137 = vadd.xlane.f32.xlu0 %v136
    %v138 = vpop.xlane.xlu0 %137
    %v139 = vsel %vm122, %v135, 0.0
    %140 = vadd.xlane.f32.xlu0 %v139
    %v141 = vpop.xlane.xlu0 %140
    %v142 = vmul.f32 %v138, %v129
    %v143 = vmul.f32 %v141, %v129
    %v144 = vadd.f32 %v142, 1e-05
    %v145 = vadd.f32 %v143, 1e-05
    %v146 = vrsqrt.pop %v144
    %v147 = vrsqrt.pop %v145
    %v148 = vmul.f32 %v132, %v146
    %v149 = vmul.f32 %v133, %v147
    %v150 = vlaneseq
    %v151 = vshrl.u32 %v150, 7
    %v152 = vsub.s32 0, %v151
    %v153 = vrot.slane %v116, %v152
    %v155 = vsel %vm122, %v148, 0
    %v158 = vsel %vm122, %v149, 0
    %160 = vmatprep.subr.mxu0 0.0
    %161 = vmatpush1.msra.mxu0 %v56
    %162 = vmatprep.subr.mxu0 0.0
    %163 = vmatpush1.msra.mxu0 %v57
    %164 = vmatprep.subr.mxu0 0.0
    %165 = vmatpush1.msra.mxu0 %v58
    %166 = vmatprep.subr.mxu0 0.0
    %167 = vmatpush1.msra.mxu0 %v59
    %168 = vmatprep.subr.mxu0 0.0
    %169 = vmatpush1.msra.mxu0 0.0
    %170 = vmatprep.subr.mxu0 0.0
    %171 = vmatpush1.msra.mxu0 0.0
    %172 = vmatprep.subr.mxu0 0.0
    %173 = vmatpush1.msra.mxu0 0.0
    %174 = vmatprep.subr.mxu0 0.0
    %175 = vmatpush1.msra.mxu0 0.0
    %176 = vmatprep.subr.mxu0 0.0
    %177 = vmatpush1.msra.mxu0 0.0
    %178 = vmatprep.subr.mxu0 0.0
    %179 = vmatpush1.msra.mxu0 0.0
    %180 = vmatprep.subr.mxu0 0.0
    %181 = vmatpush1.msra.mxu0 0.0
    %182 = vmatprep.subr.mxu0 0.0
    %183 = vmatpush1.msra.mxu0 0.0
    %184 = vmatprep.subr.mxu0 0.0
    %185 = vmatpush1.msra.mxu0 0.0
    %186 = vmatprep.subr.mxu0 0.0
    %187 = vmatpush1.msra.mxu0 0.0
    %188 = vmatprep.subr.mxu0 0.0
    %189 = vmatpush1.msra.mxu0 0.0
    %190 = vmatprep.subr.mxu0 0.0
    %191 = vmatpush1.msra.mxu0 0.0
    %192 = vmatprep.subr.mxu0 0.0
    %193 = vmatpush1.msra.mxu0 0.0
    %194 = vmatprep.subr.mxu0 0.0
    %195 = vmatpush1.msra.mxu0 0.0
    %196 = vmatprep.subr.mxu0 0.0
    %197 = vmatpush1.msra.mxu0 0.0
    %198 = vmatprep.subr.mxu0 0.0
    %199 = vmatpush1.msra.mxu0 0.0
    %200 = vmatprep.subr.mxu0 0.0
    %201 = vmatpush1.msra.mxu0 0.0
    %202 = vmatprep.subr.mxu0 0.0
    %203 = vmatpush1.msra.mxu0 0.0
    %204 = vmatprep.subr.mxu0 0.0
    %205 = vmatpush1.msra.mxu0 0.0
    %206 = vmatprep.subr.mxu0 0.0
    %207 = vmatpush1.msra.mxu0 0.0
    %208 = vmatprep.subr.mxu0 0.0
    %209 = vmatpush1.msra.mxu0 0.0
    %210 = vmatprep.subr.mxu0 0.0
    %211 = vmatpush1.msra.mxu0 0.0
    %212 = vmatprep.subr.mxu0 0.0
    %213 = vmatpush1.msra.mxu0 0.0
    %214 = vmatprep.subr.mxu0 0.0
    %215 = vmatpush1.msra.mxu0 0.0
    %216 = vmatprep.subr.mxu0 0.0
    %217 = vmatpush1.msra.mxu0 0.0
    %218 = vmatprep.subr.mxu0 0.0
    %219 = vmatpush1.msra.mxu0 0.0
    %220 = vmatprep.subr.mxu0 0.0
    %221 = vmatpush1.msra.mxu0 0.0
    %222 = vmatprep.subr.mxu0 0.0
    %223 = vmatpush1.msra.mxu0 0.0
    %224 = vmatprep.mubr.f32.mxu0 0.0
    %225 = vmatmul.mubr.f32.gmra.mrb[0].mxu0 %v155
    %v226 = vpop.f32.mrb[0].mxu0
    %v227 = vadd.f32 %v153, %v226
    %v228 = vpop.f32.mrb[0].mxu0
    %229 = vmatprep.mubr.f32.mxu0 0.0
    %230 = vmatmul.mubr.f32.gmra.mrb[0].mxu0 %v158
    %v231 = vpop.f32.mrb[0].mxu0
    %v232 = vadd.f32 %v153, %v231
    %v233 = vpop.f32.mrb[0].mxu0
    %234 = vdwg.mxu0
    %v235 = vlaneseq
    %v236 = vshrl.u32 %v235, 7
    %v237 = vsub.s32 0, %v236
    %v238 = vrot.slane %v117, %v237
    %239 = vmatprep.subr.mxu0 0.0
    %240 = vmatpush1.msra.mxu0 %v60
    %241 = vmatprep.subr.mxu0 0.0
    %242 = vmatpush1.msra.mxu0 %v61
    %243 = vmatprep.subr.mxu0 0.0
    %244 = vmatpush1.msra.mxu0 %v62
    %245 = vmatprep.subr.mxu0 0.0
    %246 = vmatpush1.msra.mxu0 %v63
    %247 = vmatprep.subr.mxu0 0.0
    %248 = vmatpush1.msra.mxu0 0.0
    %249 = vmatprep.subr.mxu0 0.0
    %250 = vmatpush1.msra.mxu0 0.0
    %251 = vmatprep.subr.mxu0 0.0
    %252 = vmatpush1.msra.mxu0 0.0
    %253 = vmatprep.subr.mxu0 0.0
    %254 = vmatpush1.msra.mxu0 0.0
    %255 = vmatprep.subr.mxu0 0.0
    %256 = vmatpush1.msra.mxu0 0.0
    %257 = vmatprep.subr.mxu0 0.0
    %258 = vmatpush1.msra.mxu0 0.0
    %259 = vmatprep.subr.mxu0 0.0
    %260 = vmatpush1.msra.mxu0 0.0
    %261 = vmatprep.subr.mxu0 0.0
    %262 = vmatpush1.msra.mxu0 0.0
    %263 = vmatprep.subr.mxu0 0.0
    %264 = vmatpush1.msra.mxu0 0.0
    %265 = vmatprep.subr.mxu0 0.0
    %266 = vmatpush1.msra.mxu0 0.0
    %267 = vmatprep.subr.mxu0 0.0
    %268 = vmatpush1.msra.mxu0 0.0
    %269 = vmatprep.subr.mxu0 0.0
    %270 = vmatpush1.msra.mxu0 0.0
    %271 = vmatprep.subr.mxu0 0.0
    %272 = vmatpush1.msra.mxu0 0.0
    %273 = vmatprep.subr.mxu0 0.0
    %274 = vmatpush1.msra.mxu0 0.0
    %275 = vmatprep.subr.mxu0 0.0
    %276 = vmatpush1.msra.mxu0 0.0
    %277 = vmatprep.subr.mxu0 0.0
    %278 = vmatpush1.msra.mxu0 0.0
    %279 = vmatprep.subr.mxu0 0.0
    %280 = vmatpush1.msra.mxu0 0.0
    %281 = vmatprep.subr.mxu0 0.0
    %282 = vmatpush1.msra.mxu0 0.0
    %283 = vmatprep.subr.mxu0 0.0
    %284 = vmatpush1.msra.mxu0 0.0
    %285 = vmatprep.subr.mxu0 0.0
    %286 = vmatpush1.msra.mxu0 0.0
    %287 = vmatprep.subr.mxu0 0.0
    %288 = vmatpush1.msra.mxu0 0.0
    %289 = vmatprep.subr.mxu0 0.0
    %290 = vmatpush1.msra.mxu0 0.0
    %291 = vmatprep.subr.mxu0 0.0
    %292 = vmatpush1.msra.mxu0 0.0
    %293 = vmatprep.subr.mxu0 0.0
    %294 = vmatpush1.msra.mxu0 0.0
    %295 = vmatprep.subr.mxu0 0.0
    %296 = vmatpush1.msra.mxu0 0.0
    %297 = vmatprep.subr.mxu0 0.0
    %298 = vmatpush1.msra.mxu0 0.0
    %299 = vmatprep.subr.mxu0 0.0
    %300 = vmatpush1.msra.mxu0 0.0
    %301 = vmatprep.subr.mxu0 0.0
    %302 = vmatpush1.msra.mxu0 0.0
    %303 = vmatprep.mubr.f32.mxu0 0.0
    %304 = vmatmul.mubr.f32.gmra.mrb[0].mxu0 %v155
    %v305 = vpop.f32.mrb[0].mxu0
    %v306 = vadd.f32 %v238, %v305
    %v307 = vpop.f32.mrb[0].mxu0
    %308 = vmatprep.mubr.f32.mxu0 0.0
    %309 = vmatmul.mubr.f32.gmra.mrb[0].mxu0 %v158
    %v310 = vpop.f32.mrb[0].mxu0
    %v311 = vadd.f32 %v238, %v310
    %v312 = vpop.f32.mrb[0].mxu0
    %313 = vdwg.mxu0
    %v314 = vlaneseq
    %v315 = vshrl.u32 %v314, 7
    %v316 = vsub.s32 0, %v315
    %v317 = vrot.slane %v118, %v316
    %318 = vmatprep.subr.mxu0 0.0
    %319 = vmatpush1.msra.mxu0 %v64
    %320 = vmatprep.subr.mxu0 0.0
    %321 = vmatpush1.msra.mxu0 %v65
    %322 = vmatprep.subr.mxu0 0.0
    %323 = vmatpush1.msra.mxu0 %v66
    %324 = vmatprep.subr.mxu0 0.0
    %325 = vmatpush1.msra.mxu0 %v67
    %326 = vmatprep.subr.mxu0 0.0
    %327 = vmatpush1.msra.mxu0 0.0
    %328 = vmatprep.subr.mxu0 0.0
    %329 = vmatpush1.msra.mxu0 0.0
    %330 = vmatprep.subr.mxu0 0.0
    %331 = vmatpush1.msra.mxu0 0.0
    %332 = vmatprep.subr.mxu0 0.0
    %333 = vmatpush1.msra.mxu0 0.0
    %334 = vmatprep.subr.mxu0 0.0
    %335 = vmatpush1.msra.mxu0 0.0
    %336 = vmatprep.subr.mxu0 0.0
    %337 = vmatpush1.msra.mxu0 0.0
    %338 = vmatprep.subr.mxu0 0.0
    %339 = vmatpush1.msra.mxu0 0.0
    %340 = vmatprep.subr.mxu0 0.0
    %341 = vmatpush1.msra.mxu0 0.0
    %342 = vmatprep.subr.mxu0 0.0
    %343 = vmatpush1.msra.mxu0 0.0
    %344 = vmatprep.subr.mxu0 0.0
    %345 = vmatpush1.msra.mxu0 0.0
    %346 = vmatprep.subr.mxu0 0.0
    %347 = vmatpush1.msra.mxu0 0.0
    %348 = vmatprep.subr.mxu0 0.0
    %349 = vmatpush1.msra.mxu0 0.0
    %350 = vmatprep.subr.mxu0 0.0
    %351 = vmatpush1.msra.mxu0 0.0
    %352 = vmatprep.subr.mxu0 0.0
    %353 = vmatpush1.msra.mxu0 0.0
    %354 = vmatprep.subr.mxu0 0.0
    %355 = vmatpush1.msra.mxu0 0.0
    %356 = vmatprep.subr.mxu0 0.0
    %357 = vmatpush1.msra.mxu0 0.0
    %358 = vmatprep.subr.mxu0 0.0
    %359 = vmatpush1.msra.mxu0 0.0
    %360 = vmatprep.subr.mxu0 0.0
    %361 = vmatpush1.msra.mxu0 0.0
    %362 = vmatprep.subr.mxu0 0.0
    %363 = vmatpush1.msra.mxu0 0.0
    %364 = vmatprep.subr.mxu0 0.0
    %365 = vmatpush1.msra.mxu0 0.0
    %366 = vmatprep.subr.mxu0 0.0
    %367 = vmatpush1.msra.mxu0 0.0
    %368 = vmatprep.subr.mxu0 0.0
    %369 = vmatpush1.msra.mxu0 0.0
    %370 = vmatprep.subr.mxu0 0.0
    %371 = vmatpush1.msra.mxu0 0.0
    %372 = vmatprep.subr.mxu0 0.0
    %373 = vmatpush1.msra.mxu0 0.0
    %374 = vmatprep.subr.mxu0 0.0
    %375 = vmatpush1.msra.mxu0 0.0
    %376 = vmatprep.subr.mxu0 0.0
    %377 = vmatpush1.msra.mxu0 0.0
    %378 = vmatprep.subr.mxu0 0.0
    %379 = vmatpush1.msra.mxu0 0.0
    %380 = vmatprep.subr.mxu0 0.0
    %381 = vmatpush1.msra.mxu0 0.0
    %382 = vmatprep.mubr.f32.mxu0 0.0
    %383 = vmatmul.mubr.f32.gmra.mrb[0].mxu0 %v155
    %v384 = vpop.f32.mrb[0].mxu0
    %v385 = vadd.f32 %v317, %v384
    %v386 = vpop.f32.mrb[0].mxu0
    %387 = vmatprep.mubr.f32.mxu0 0.0
    %388 = vmatmul.mubr.f32.gmra.mrb[0].mxu0 %v158
    %v389 = vpop.f32.mrb[0].mxu0
    %v390 = vadd.f32 %v317, %v389
    %v391 = vpop.f32.mrb[0].mxu0
    %392 = vdwg.mxu0
    %393 = vxpose.xlu0.b32.start [1/16] %v306, 128
    %394 = vxpose.xlu0.b32.cont [2/16] %v311, 128
    %395 = vxpose.xlu0.b32.cont [3/16] 0.0, 128
    %396 = vxpose.xlu0.b32.cont [4/16] 0.0, 128
    %397 = vxpose.xlu0.b32.cont [5/16] 0.0, 128
    %398 = vxpose.xlu0.b32.cont [6/16] 0.0, 128
    %399 = vxpose.xlu0.b32.cont [7/16] 0.0, 128
    %400 = vxpose.xlu0.b32.cont [8/16] 0.0, 128
    %401 = vxpose.xlu0.b32.cont [9/16] 0.0, 128
    %402 = vxpose.xlu0.b32.cont [10/16] 0.0, 128
    %403 = vxpose.xlu0.b32.cont [11/16] 0.0, 128
    %404 = vxpose.xlu0.b32.cont [12/16] 0.0, 128
    %405 = vxpose.xlu0.b32.cont [13/16] 0.0, 128
    %406 = vxpose.xlu0.b32.cont [14/16] 0.0, 128
    %407 = vxpose.xlu0.b32.cont [15/16] 0.0, 128
    %408 = vxpose.xlu0.b32.end [16/16] 0.0, 128
    %v409 = vpop.trf.xlu0
    %v410 = vpop.trf.xlu0
    %v411 = vpop.trf.xlu0
    %v412 = vpop.trf.xlu0
    %v413 = vpop.trf.xlu0
    %v414 = vpop.trf.xlu0
    %v415 = vpop.trf.xlu0
    %v416 = vpop.trf.xlu0
    %v417 = vpop.trf.xlu0
    %v418 = vpop.trf.xlu0
    %v419 = vpop.trf.xlu0
    %v420 = vpop.trf.xlu0
    %v421 = vpop.trf.xlu0
    %v422 = vpop.trf.xlu0
    %v423 = vpop.trf.xlu0
    %v424 = vpop.trf.xlu0
    %vm425 = vcmask 130048
    %v427 = vsel %vm425, %v409, 0
    %v430 = vsel %vm425, %v410, 0
    %v433 = vsel %vm425, %v411, 0
    %v436 = vsel %vm425, %v412, 0
    %438 = vmatprep.subr.mxu0 0.0
    %439 = vmatpush1.msra.mxu0 %v84
    %440 = vmatprep.subr.mxu0 0.0
    %441 = vmatpush1.msra.mxu0 %v85
    %442 = vmatprep.subr.mxu0 0.0
    %443 = vmatpush1.msra.mxu0 0.0
    %444 = vmatprep.subr.mxu0 0.0
    %445 = vmatpush1.msra.mxu0 0.0
    %446 = vmatprep.subr.mxu0 0.0
    %447 = vmatpush1.msra.mxu0 0.0
    %448 = vmatprep.subr.mxu0 0.0
    %449 = vmatpush1.msra.mxu0 0.0
    %450 = vmatprep.subr.mxu0 0.0
    %451 = vmatpush1.msra.mxu0 0.0
    %452 = vmatprep.subr.mxu0 0.0
    %453 = vmatpush1.msra.mxu0 0.0
    %454 = vmatprep.subr.mxu0 0.0
    %455 = vmatpush1.msra.mxu0 0.0
    %456 = vmatprep.subr.mxu0 0.0
    %457 = vmatpush1.msra.mxu0 0.0
    %458 = vmatprep.subr.mxu0 0.0
    %459 = vmatpush1.msra.mxu0 0.0
    %460 = vmatprep.subr.mxu0 0.0
    %461 = vmatpush1.msra.mxu0 0.0
    %462 = vmatprep.subr.mxu0 0.0
    %463 = vmatpush1.msra.mxu0 0.0
    %464 = vmatprep.subr.mxu0 0.0
    %465 = vmatpush1.msra.mxu0 0.0
    %466 = vmatprep.subr.mxu0 0.0
    %467 = vmatpush1.msra.mxu0 0.0
    %468 = vmatprep.subr.mxu0 0.0
    %469 = vmatpush1.msra.mxu0 0.0
    %470 = vmatprep.subr.mxu0 0.0
    %471 = vmatpush1.msra.mxu0 0.0
    %472 = vmatprep.subr.mxu0 0.0
    %473 = vmatpush1.msra.mxu0 0.0
    %474 = vmatprep.subr.mxu0 0.0
    %475 = vmatpush1.msra.mxu0 0.0
    %476 = vmatprep.subr.mxu0 0.0
    %477 = vmatpush1.msra.mxu0 0.0
    %478 = vmatprep.subr.mxu0 0.0
    %479 = vmatpush1.msra.mxu0 0.0
    %480 = vmatprep.subr.mxu0 0.0
    %481 = vmatpush1.msra.mxu0 0.0
    %482 = vmatprep.subr.mxu0 0.0
    %483 = vmatpush1.msra.mxu0 0.0
    %484 = vmatprep.subr.mxu0 0.0
    %485 = vmatpush1.msra.mxu0 0.0
    %486 = vmatprep.subr.mxu0 0.0
    %487 = vmatpush1.msra.mxu0 0.0
    %488 = vmatprep.subr.mxu0 0.0
    %489 = vmatpush1.msra.mxu0 0.0
    %490 = vmatprep.subr.mxu0 0.0
    %491 = vmatpush1.msra.mxu0 0.0
    %492 = vmatprep.subr.mxu0 0.0
    %493 = vmatpush1.msra.mxu0 0.0
    %494 = vmatprep.subr.mxu0 0.0
    %495 = vmatpush1.msra.mxu0 0.0
    %496 = vmatprep.subr.mxu0 0.0
    %497 = vmatpush1.msra.mxu0 0.0
    %498 = vmatprep.subr.mxu0 0.0
    %499 = vmatpush1.msra.mxu0 0.0
    %500 = vmatprep.subr.mxu0 0.0
    %501 = vmatpush1.msra.mxu0 0.0
    %502 = vmatprep.mubr.f32.mxu0 0.0
    %503 = vmatmul.mubr.f32.gmra.mrb[0].mxu0 %v427
    %v504 = vpop.f32.mrb[0].mxu0
    %v505 = vadd.f32 0.0, %v504
    %v506 = vpop.f32.mrb[0].mxu0
    %507 = vmatprep.mubr.f32.mxu0 0.0
    %508 = vmatmul.mubr.f32.gmra.mrb[0].mxu0 %v430
    %v509 = vpop.f32.mrb[0].mxu0
    %v510 = vadd.f32 0.0, %v509
    %v511 = vpop.f32.mrb[0].mxu0
    %512 = vmatprep.mubr.f32.mxu0 0.0
    %513 = vmatmul.mubr.f32.gmra.mrb[0].mxu0 %v433
    %v514 = vpop.f32.mrb[0].mxu0
    %v515 = vadd.f32 0.0, %v514
    %v516 = vpop.f32.mrb[0].mxu0
    %517 = vmatprep.mubr.f32.mxu0 0.0
    %518 = vmatmul.mubr.f32.gmra.mrb[0].mxu0 %v436
    %v519 = vpop.f32.mrb[0].mxu0
    %v520 = vadd.f32 0.0, %v519
    %v521 = vpop.f32.mrb[0].mxu0
    %522 = vdwg.mxu0
    %v523 = vmul.f32 %v505, %v104
    %v524 = vmul.f32 %v510, %v105
    %v525 = vmul.f32 %v515, %v106
    %v526 = vmul.f32 %v520, %v107
    %v528 = vsel %vm122, %v227, 0
    %v531 = vsel %vm122, %v232, 0
    %533 = vmatprep.subr.mxu0 0.0
    %534 = vmatpush1.msra.mxu0 %v523
    %535 = vmatprep.subr.mxu0 0.0
    %536 = vmatpush1.msra.mxu0 %v524
    %537 = vmatprep.subr.mxu0 0.0
    %538 = vmatpush1.msra.mxu0 %v525
    %539 = vmatprep.subr.mxu0 0.0
    %540 = vmatpush1.msra.mxu0 %v526
    %541 = vmatprep.subr.mxu0 0.0
    %542 = vmatpush1.msra.mxu0 0.0
    %543 = vmatprep.subr.mxu0 0.0
    %544 = vmatpush1.msra.mxu0 0.0
    %545 = vmatprep.subr.mxu0 0.0
    %546 = vmatpush1.msra.mxu0 0.0
    %547 = vmatprep.subr.mxu0 0.0
    %548 = vmatpush1.msra.mxu0 0.0
    %549 = vmatprep.subr.mxu0 0.0
    %550 = vmatpush1.msra.mxu0 0.0
    %551 = vmatprep.subr.mxu0 0.0
    %552 = vmatpush1.msra.mxu0 0.0
    %553 = vmatprep.subr.mxu0 0.0
    %554 = vmatpush1.msra.mxu0 0.0
    %555 = vmatprep.subr.mxu0 0.0
    %556 = vmatpush1.msra.mxu0 0.0
    %557 = vmatprep.subr.mxu0 0.0
    %558 = vmatpush1.msra.mxu0 0.0
    %559 = vmatprep.subr.mxu0 0.0
    %560 = vmatpush1.msra.mxu0 0.0
    %561 = vmatprep.subr.mxu0 0.0
    %562 = vmatpush1.msra.mxu0 0.0
    %563 = vmatprep.subr.mxu0 0.0
    %564 = vmatpush1.msra.mxu0 0.0
    %565 = vmatprep.subr.mxu0 0.0
    %566 = vmatpush1.msra.mxu0 0.0
    %567 = vmatprep.subr.mxu0 0.0
    %568 = vmatpush1.msra.mxu0 0.0
    %569 = vmatprep.subr.mxu0 0.0
    %570 = vmatpush1.msra.mxu0 0.0
    %571 = vmatprep.subr.mxu0 0.0
    %572 = vmatpush1.msra.mxu0 0.0
    %573 = vmatprep.subr.mxu0 0.0
    %574 = vmatpush1.msra.mxu0 0.0
    %575 = vmatprep.subr.mxu0 0.0
    %576 = vmatpush1.msra.mxu0 0.0
    %577 = vmatprep.subr.mxu0 0.0
    %578 = vmatpush1.msra.mxu0 0.0
    %579 = vmatprep.subr.mxu0 0.0
    %580 = vmatpush1.msra.mxu0 0.0
    %581 = vmatprep.subr.mxu0 0.0
    %582 = vmatpush1.msra.mxu0 0.0
    %583 = vmatprep.subr.mxu0 0.0
    %584 = vmatpush1.msra.mxu0 0.0
    %585 = vmatprep.subr.mxu0 0.0
    %586 = vmatpush1.msra.mxu0 0.0
    %587 = vmatprep.subr.mxu0 0.0
    %588 = vmatpush1.msra.mxu0 0.0
    %589 = vmatprep.subr.mxu0 0.0
    %590 = vmatpush1.msra.mxu0 0.0
    %591 = vmatprep.subr.mxu0 0.0
    %592 = vmatpush1.msra.mxu0 0.0
    %593 = vmatprep.subr.mxu0 0.0
    %594 = vmatpush1.msra.mxu0 0.0
    %595 = vmatprep.subr.mxu0 0.0
    %596 = vmatpush1.msra.mxu0 0.0
    %597 = vmatprep.mubr.f32.mxu0 0.0
    %598 = vmatmul.mubr.f32.gmra.mrb[0].mxu0 %v528
    %v599 = vpop.f32.mrb[0].mxu0
    %v600 = vadd.f32 %v102, %v599
    %v601 = vpop.f32.mrb[0].mxu0
    %602 = vmatprep.mubr.f32.mxu0 0.0
    %603 = vmatmul.mubr.f32.gmra.mrb[0].mxu0 %v531
    %v604 = vpop.f32.mrb[0].mxu0
    %v605 = vadd.f32 %v103, %v604
    %v606 = vpop.f32.mrb[0].mxu0
    %607 = vdwg.mxu0
    %vm608 = vcmask 523264
    %v609 = vsel %vm608, %v600, -inf
    %610 = vmax.xlane.f32.xlu0 %v609
    %v611 = vpop.xlane.xlu0 %610
    %v612 = vsel %vm608, %v605, -inf
    %613 = vmax.xlane.f32.xlu0 %v612
    %v614 = vpop.xlane.xlu0 %613
    %v615 = vsub.f32 %v600, %v611
    %v616 = vsub.f32 %v605, %v614
    %v617 = vmul.f32 %v615, 1.442695
    %v618 = vpow.pop %v617
    %v619 = vmul.f32 %v616, 1.442695
    %v620 = vpow.pop %v619
    %v622 = vsel %vm608, %v618, 0
    %v625 = vsel %vm608, %v620, 0
    %627 = vmatprep.subr.mxu0 0.0
    %628 = vmatpush1.msra.mxu0 %v94
    %629 = vmatprep.subr.mxu0 0.0
    %630 = vmatpush1.msra.mxu0 %v95
    %631 = vmatprep.subr.mxu0 0.0
    %632 = vmatpush1.msra.mxu0 %v96
    %633 = vmatprep.subr.mxu0 0.0
    %634 = vmatpush1.msra.mxu0 %v97
    %635 = vmatprep.subr.mxu0 0.0
    %636 = vmatpush1.msra.mxu0 %v98
    %637 = vmatprep.subr.mxu0 0.0
    %638 = vmatpush1.msra.mxu0 %v99
    %639 = vmatprep.subr.mxu0 0.0
    %640 = vmatpush1.msra.mxu0 %v100
    %641 = vmatprep.subr.mxu0 0.0
    %642 = vmatpush1.msra.mxu0 %v101
    %643 = vmatprep.subr.mxu0 0.0
    %644 = vmatpush1.msra.mxu0 0.0
    %645 = vmatprep.subr.mxu0 0.0
    %646 = vmatpush1.msra.mxu0 0.0
    %647 = vmatprep.subr.mxu0 0.0
    %648 = vmatpush1.msra.mxu0 0.0
    %649 = vmatprep.subr.mxu0 0.0
    %650 = vmatpush1.msra.mxu0 0.0
    %651 = vmatprep.subr.mxu0 0.0
    %652 = vmatpush1.msra.mxu0 0.0
    %653 = vmatprep.subr.mxu0 0.0
    %654 = vmatpush1.msra.mxu0 0.0
    %655 = vmatprep.subr.mxu0 0.0
    %656 = vmatpush1.msra.mxu0 0.0
    %657 = vmatprep.subr.mxu0 0.0
    %658 = vmatpush1.msra.mxu0 0.0
    %659 = vmatprep.subr.mxu0 0.0
    %660 = vmatpush1.msra.mxu0 0.0
    %661 = vmatprep.subr.mxu0 0.0
    %662 = vmatpush1.msra.mxu0 0.0
    %663 = vmatprep.subr.mxu0 0.0
    %664 = vmatpush1.msra.mxu0 0.0
    %665 = vmatprep.subr.mxu0 0.0
    %666 = vmatpush1.msra.mxu0 0.0
    %667 = vmatprep.subr.mxu0 0.0
    %668 = vmatpush1.msra.mxu0 0.0
    %669 = vmatprep.subr.mxu0 0.0
    %670 = vmatpush1.msra.mxu0 0.0
    %671 = vmatprep.subr.mxu0 0.0
    %672 = vmatpush1.msra.mxu0 0.0
    %673 = vmatprep.subr.mxu0 0.0
    %674 = vmatpush1.msra.mxu0 0.0
    %675 = vmatprep.subr.mxu0 0.0
    %676 = vmatpush1.msra.mxu0 0.0
    %677 = vmatprep.subr.mxu0 0.0
    %678 = vmatpush1.msra.mxu0 0.0
    %679 = vmatprep.subr.mxu0 0.0
    %680 = vmatpush1.msra.mxu0 0.0
    %681 = vmatprep.subr.mxu0 0.0
    %682 = vmatpush1.msra.mxu0 0.0
    %683 = vmatprep.subr.mxu0 0.0
    %684 = vmatpush1.msra.mxu0 0.0
    %685 = vmatprep.subr.mxu0 0.0
    %686 = vmatpush1.msra.mxu0 0.0
    %687 = vmatprep.subr.mxu0 0.0
    %688 = vmatpush1.msra.mxu0 0.0
    %689 = vmatprep.subr.mxu0 0.0
    %690 = vmatpush1.msra.mxu0 0.0
    %691 = vmatprep.mubr.f32.mxu0 0.0
    %692 = vmatmul.mubr.f32.gmra.mrb[0].mxu0 %v622
    %v693 = vpop.f32.mrb[0].mxu0
    %v694 = vadd.f32 0.0, %v693
    %v695 = vpop.f32.mrb[0].mxu0
    %696 = vmatprep.mubr.f32.mxu0 0.0
    %697 = vmatmul.mubr.f32.gmra.mrb[0].mxu0 %v625
    %v698 = vpop.f32.mrb[0].mxu0
    %v699 = vadd.f32 0.0, %v698
    %v700 = vpop.f32.mrb[0].mxu0
    %701 = vdwg.mxu0
    %v702 = vrcp.pop %v694
    %v703 = vmul.f32 %v618, %v702
    %v704 = vrcp.pop %v699
    %v705 = vmul.f32 %v620, %v704
    %v707 = vsel %vm425, %v86, 0
    %v710 = vsel %vm425, %v87, 0
    %v713 = vsel %vm425, %v88, 0
    %v716 = vsel %vm425, %v89, 0
    %v719 = vsel %vm425, %v90, 0
    %v722 = vsel %vm425, %v91, 0
    %v725 = vsel %vm425, %v92, 0
    %v728 = vsel %vm425, %v93, 0
    %730 = vmatprep.subr.mxu0 0.0
    %731 = vmatpush1.msra.mxu0 %v385
    %732 = vmatprep.subr.mxu0 0.0
    %733 = vmatpush1.msra.mxu0 %v390
    %734 = vmatprep.subr.mxu0 0.0
    %735 = vmatpush1.msra.mxu0 0.0
    %736 = vmatprep.subr.mxu0 0.0
    %737 = vmatpush1.msra.mxu0 0.0
    %738 = vmatprep.subr.mxu0 0.0
    %739 = vmatpush1.msra.mxu0 0.0
    %740 = vmatprep.subr.mxu0 0.0
    %741 = vmatpush1.msra.mxu0 0.0
    %742 = vmatprep.subr.mxu0 0.0
    %743 = vmatpush1.msra.mxu0 0.0
    %744 = vmatprep.subr.mxu0 0.0
    %745 = vmatpush1.msra.mxu0 0.0
    %746 = vmatprep.subr.mxu0 0.0
    %747 = vmatpush1.msra.mxu0 0.0
    %748 = vmatprep.subr.mxu0 0.0
    %749 = vmatpush1.msra.mxu0 0.0
    %750 = vmatprep.subr.mxu0 0.0
    %751 = vmatpush1.msra.mxu0 0.0
    %752 = vmatprep.subr.mxu0 0.0
    %753 = vmatpush1.msra.mxu0 0.0
    %754 = vmatprep.subr.mxu0 0.0
    %755 = vmatpush1.msra.mxu0 0.0
    %756 = vmatprep.subr.mxu0 0.0
    %757 = vmatpush1.msra.mxu0 0.0
    %758 = vmatprep.subr.mxu0 0.0
    %759 = vmatpush1.msra.mxu0 0.0
    %760 = vmatprep.subr.mxu0 0.0
    %761 = vmatpush1.msra.mxu0 0.0
    %762 = vmatprep.subr.mxu0 0.0
    %763 = vmatpush1.msra.mxu0 0.0
    %764 = vmatprep.subr.mxu0 0.0
    %765 = vmatpush1.msra.mxu0 0.0
    %766 = vmatprep.subr.mxu0 0.0
    %767 = vmatpush1.msra.mxu0 0.0
    %768 = vmatprep.subr.mxu0 0.0
    %769 = vmatpush1.msra.mxu0 0.0
    %770 = vmatprep.subr.mxu0 0.0
    %771 = vmatpush1.msra.mxu0 0.0
    %772 = vmatprep.subr.mxu0 0.0
    %773 = vmatpush1.msra.mxu0 0.0
    %774 = vmatprep.subr.mxu0 0.0
    %775 = vmatpush1.msra.mxu0 0.0
    %776 = vmatprep.subr.mxu0 0.0
    %777 = vmatpush1.msra.mxu0 0.0
    %778 = vmatprep.subr.mxu0 0.0
    %779 = vmatpush1.msra.mxu0 0.0
    %780 = vmatprep.subr.mxu0 0.0
    %781 = vmatpush1.msra.mxu0 0.0
    %782 = vmatprep.subr.mxu0 0.0
    %783 = vmatpush1.msra.mxu0 0.0
    %784 = vmatprep.subr.mxu0 0.0
    %785 = vmatpush1.msra.mxu0 0.0
    %786 = vmatprep.subr.mxu0 0.0
    %787 = vmatpush1.msra.mxu0 0.0
    %788 = vmatprep.subr.mxu0 0.0
    %789 = vmatpush1.msra.mxu0 0.0
    %790 = vmatprep.subr.mxu0 0.0
    %791 = vmatpush1.msra.mxu0 0.0
    %792 = vmatprep.subr.mxu0 0.0
    %793 = vmatpush1.msra.mxu0 0.0
    %794 = vmatprep.mubr.f32.mxu0 0.0
    %795 = vmatmul.mubr.f32.gmra.mrb[0].mxu0 %v707
    %v796 = vpop.f32.mrb[0].mxu0
    %v797 = vadd.f32 0.0, %v796
    %v798 = vpop.f32.mrb[0].mxu0
    %799 = vmatprep.mubr.f32.mxu0 0.0
    %800 = vmatmul.mubr.f32.gmra.mrb[0].mxu0 %v710
    %v801 = vpop.f32.mrb[0].mxu0
    %v802 = vadd.f32 0.0, %v801
    %v803 = vpop.f32.mrb[0].mxu0
    %804 = vmatprep.mubr.f32.mxu0 0.0
    %805 = vmatmul.mubr.f32.gmra.mrb[0].mxu0 %v713
    %v806 = vpop.f32.mrb[0].mxu0
    %v807 = vadd.f32 0.0, %v806
    %v808 = vpop.f32.mrb[0].mxu0
    %809 = vmatprep.mubr.f32.mxu0 0.0
    %810 = vmatmul.mubr.f32.gmra.mrb[0].mxu0 %v716
    %v811 = vpop.f32.mrb[0].mxu0
    %v812 = vadd.f32 0.0, %v811
    %v813 = vpop.f32.mrb[0].mxu0
    %814 = vmatprep.mubr.f32.mxu0 0.0
    %815 = vmatmul.mubr.f32.gmra.mrb[0].mxu0 %v719
    %v816 = vpop.f32.mrb[0].mxu0
    %v817 = vadd.f32 0.0, %v816
    %v818 = vpop.f32.mrb[0].mxu0
    %819 = vmatprep.mubr.f32.mxu0 0.0
    %820 = vmatmul.mubr.f32.gmra.mrb[0].mxu0 %v722
    %v821 = vpop.f32.mrb[0].mxu0
    %v822 = vadd.f32 0.0, %v821
    %v823 = vpop.f32.mrb[0].mxu0
    %824 = vmatprep.mubr.f32.mxu0 0.0
    %825 = vmatmul.mubr.f32.gmra.mrb[0].mxu0 %v725
    %v826 = vpop.f32.mrb[0].mxu0
    %v827 = vadd.f32 0.0, %v826
    %v828 = vpop.f32.mrb[0].mxu0
    %829 = vmatprep.mubr.f32.mxu0 0.0
    %830 = vmatmul.mubr.f32.gmra.mrb[0].mxu0 %v728
    %v831 = vpop.f32.mrb[0].mxu0
    %v832 = vadd.f32 0.0, %v831
    %v833 = vpop.f32.mrb[0].mxu0
    %834 = vdwg.mxu0
    %v835 = vmul.f32 %v797, %v108
    %v836 = vmul.f32 %v802, %v109
    %v837 = vmul.f32 %v807, %v110
    %v838 = vmul.f32 %v812, %v111
    %v839 = vmul.f32 %v817, %v112
    %v840 = vmul.f32 %v822, %v113
    %v841 = vmul.f32 %v827, %v114
    %v842 = vmul.f32 %v832, %v115
    %v844 = vsel %vm608, %v703, 0
    %v847 = vsel %vm608, %v705, 0
    %849 = vmatprep.subr.mxu0 0.0
    %850 = vmatpush1.msra.mxu0 %v835
    %851 = vmatprep.subr.mxu0 0.0
    %852 = vmatpush1.msra.mxu0 %v836
    %853 = vmatprep.subr.mxu0 0.0
    %854 = vmatpush1.msra.mxu0 %v837
    %855 = vmatprep.subr.mxu0 0.0
    %856 = vmatpush1.msra.mxu0 %v838
    %857 = vmatprep.subr.mxu0 0.0
    %858 = vmatpush1.msra.mxu0 %v839
    %859 = vmatprep.subr.mxu0 0.0
    %860 = vmatpush1.msra.mxu0 %v840
    %861 = vmatprep.subr.mxu0 0.0
    %862 = vmatpush1.msra.mxu0 %v841
    %863 = vmatprep.subr.mxu0 0.0
    %864 = vmatpush1.msra.mxu0 %v842
    %865 = vmatprep.subr.mxu0 0.0
    %866 = vmatpush1.msra.mxu0 0.0
    %867 = vmatprep.subr.mxu0 0.0
    %868 = vmatpush1.msra.mxu0 0.0
    %869 = vmatprep.subr.mxu0 0.0
    %870 = vmatpush1.msra.mxu0 0.0
    %871 = vmatprep.subr.mxu0 0.0
    %872 = vmatpush1.msra.mxu0 0.0
    %873 = vmatprep.subr.mxu0 0.0
    %874 = vmatpush1.msra.mxu0 0.0
    %875 = vmatprep.subr.mxu0 0.0
    %876 = vmatpush1.msra.mxu0 0.0
    %877 = vmatprep.subr.mxu0 0.0
    %878 = vmatpush1.msra.mxu0 0.0
    %879 = vmatprep.subr.mxu0 0.0
    %880 = vmatpush1.msra.mxu0 0.0
    %881 = vmatprep.subr.mxu0 0.0
    %882 = vmatpush1.msra.mxu0 0.0
    %883 = vmatprep.subr.mxu0 0.0
    %884 = vmatpush1.msra.mxu0 0.0
    %885 = vmatprep.subr.mxu0 0.0
    %886 = vmatpush1.msra.mxu0 0.0
    %887 = vmatprep.subr.mxu0 0.0
    %888 = vmatpush1.msra.mxu0 0.0
    %889 = vmatprep.subr.mxu0 0.0
    %890 = vmatpush1.msra.mxu0 0.0
    %891 = vmatprep.subr.mxu0 0.0
    %892 = vmatpush1.msra.mxu0 0.0
    %893 = vmatprep.subr.mxu0 0.0
    %894 = vmatpush1.msra.mxu0 0.0
    %895 = vmatprep.subr.mxu0 0.0
    %896 = vmatpush1.msra.mxu0 0.0
    %897 = vmatprep.subr.mxu0 0.0
    %898 = vmatpush1.msra.mxu0 0.0
    %899 = vmatprep.subr.mxu0 0.0
    %900 = vmatpush1.msra.mxu0 0.0
    %901 = vmatprep.subr.mxu0 0.0
    %902 = vmatpush1.msra.mxu0 0.0
    %903 = vmatprep.subr.mxu0 0.0
    %904 = vmatpush1.msra.mxu0 0.0
    %905 = vmatprep.subr.mxu0 0.0
    %906 = vmatpush1.msra.mxu0 0.0
    %907 = vmatprep.subr.mxu0 0.0
    %908 = vmatpush1.msra.mxu0 0.0
    %909 = vmatprep.subr.mxu0 0.0
    %910 = vmatpush1.msra.mxu0 0.0
    %911 = vmatprep.subr.mxu0 0.0
    %912 = vmatpush1.msra.mxu0 0.0
    %913 = vmatprep.mubr.f32.mxu0 0.0
    %914 = vmatmul.mubr.f32.gmra.mrb[0].mxu0 %v844
    %v915 = vpop.f32.mrb[0].mxu0
    %v916 = vadd.f32 0.0, %v915
    %v917 = vpop.f32.mrb[0].mxu0
    %918 = vmatprep.mubr.f32.mxu0 0.0
    %919 = vmatmul.mubr.f32.gmra.mrb[0].mxu0 %v847
    %v920 = vpop.f32.mrb[0].mxu0
    %v921 = vadd.f32 0.0, %v920
    %v922 = vpop.f32.mrb[0].mxu0
    %923 = vdwg.mxu0
    %v924 = vlaneseq
    %v925 = vshrl.u32 %v924, 7
    %v926 = vsub.s32 0, %v925
    %v927 = vrot.slane %v119, %v926
    %v929 = vsel %vm122, %v916, 0
    %v932 = vsel %vm122, %v921, 0
    %934 = vmatprep.subr.mxu0 0.0
    %935 = vmatpush1.msra.mxu0 %v68
    %936 = vmatprep.subr.mxu0 0.0
    %937 = vmatpush1.msra.mxu0 %v69
    %938 = vmatprep.subr.mxu0 0.0
    %939 = vmatpush1.msra.mxu0 %v70
    %940 = vmatprep.subr.mxu0 0.0
    %941 = vmatpush1.msra.mxu0 %v71
    %942 = vmatprep.subr.mxu0 0.0
    %943 = vmatpush1.msra.mxu0 0.0
    %944 = vmatprep.subr.mxu0 0.0
    %945 = vmatpush1.msra.mxu0 0.0
    %946 = vmatprep.subr.mxu0 0.0
    %947 = vmatpush1.msra.mxu0 0.0
    %948 = vmatprep.subr.mxu0 0.0
    %949 = vmatpush1.msra.mxu0 0.0
    %950 = vmatprep.subr.mxu0 0.0
    %951 = vmatpush1.msra.mxu0 0.0
    %952 = vmatprep.subr.mxu0 0.0
    %953 = vmatpush1.msra.mxu0 0.0
    %954 = vmatprep.subr.mxu0 0.0
    %955 = vmatpush1.msra.mxu0 0.0
    %956 = vmatprep.subr.mxu0 0.0
    %957 = vmatpush1.msra.mxu0 0.0
    %958 = vmatprep.subr.mxu0 0.0
    %959 = vmatpush1.msra.mxu0 0.0
    %960 = vmatprep.subr.mxu0 0.0
    %961 = vmatpush1.msra.mxu0 0.0
    %962 = vmatprep.subr.mxu0 0.0
    %963 = vmatpush1.msra.mxu0 0.0
    %964 = vmatprep.subr.mxu0 0.0
    %965 = vmatpush1.msra.mxu0 0.0
    %966 = vmatprep.subr.mxu0 0.0
    %967 = vmatpush1.msra.mxu0 0.0
    %968 = vmatprep.subr.mxu0 0.0
    %969 = vmatpush1.msra.mxu0 0.0
    %970 = vmatprep.subr.mxu0 0.0
    %971 = vmatpush1.msra.mxu0 0.0
    %972 = vmatprep.subr.mxu0 0.0
    %973 = vmatpush1.msra.mxu0 0.0
    %974 = vmatprep.subr.mxu0 0.0
    %975 = vmatpush1.msra.mxu0 0.0
    %976 = vmatprep.subr.mxu0 0.0
    %977 = vmatpush1.msra.mxu0 0.0
    %978 = vmatprep.subr.mxu0 0.0
    %979 = vmatpush1.msra.mxu0 0.0
    %980 = vmatprep.subr.mxu0 0.0
    %981 = vmatpush1.msra.mxu0 0.0
    %982 = vmatprep.subr.mxu0 0.0
    %983 = vmatpush1.msra.mxu0 0.0
    %984 = vmatprep.subr.mxu0 0.0
    %985 = vmatpush1.msra.mxu0 0.0
    %986 = vmatprep.subr.mxu0 0.0
    %987 = vmatpush1.msra.mxu0 0.0
    %988 = vmatprep.subr.mxu0 0.0
    %989 = vmatpush1.msra.mxu0 0.0
    %990 = vmatprep.subr.mxu0 0.0
    %991 = vmatpush1.msra.mxu0 0.0
    %992 = vmatprep.subr.mxu0 0.0
    %993 = vmatpush1.msra.mxu0 0.0
    %994 = vmatprep.subr.mxu0 0.0
    %995 = vmatpush1.msra.mxu0 0.0
    %996 = vmatprep.subr.mxu0 0.0
    %997 = vmatpush1.msra.mxu0 0.0
    %998 = vmatprep.mubr.f32.mxu0 0.0
    %999 = vmatmul.mubr.f32.gmra.mrb[0].mxu0 %v929
    %v1000 = vpop.f32.mrb[0].mxu0
    %v1001 = vadd.f32 %v927, %v1000
    %v1002 = vpop.f32.mrb[0].mxu0
    %1003 = vmatprep.mubr.f32.mxu0 0.0
    %1004 = vmatmul.mubr.f32.gmra.mrb[0].mxu0 %v932
    %v1005 = vpop.f32.mrb[0].mxu0
    %v1006 = vadd.f32 %v927, %v1005
    %v1007 = vpop.f32.mrb[0].mxu0
    %1008 = vdwg.mxu0
    %v1009 = vadd.f32 %v54, %v1001
    %v1010 = vadd.f32 %v55, %v1006
    %v1011 = vsel %vm122, %v1009, 0.0
    %1012 = vadd.xlane.f32.xlu0 %v1011
    %v1013 = vpop.xlane.xlu0 %1012
    %v1014 = vsel %vm122, %v1010, 0.0
    %1015 = vadd.xlane.f32.xlu0 %v1014
    %v1016 = vpop.xlane.xlu0 %1015
    %v1017 = vmul.f32 %v1013, %v129
    %v1018 = vmul.f32 %v1016, %v129
    %v1019 = vsub.f32 %v1009, %v1017
    %v1020 = vsub.f32 %v1010, %v1018
    %v1021 = vmul.f32 %v1019, %v1019
    %v1022 = vmul.f32 %v1020, %v1020
    %v1023 = vsel %vm122, %v1021, 0.0
    %1024 = vadd.xlane.f32.xlu0 %v1023
    %v1025 = vpop.xlane.xlu0 %1024
    %v1026 = vsel %vm122, %v1022, 0.0
    %1027 = vadd.xlane.f32.xlu0 %v1026
    %v1028 = vpop.xlane.xlu0 %1027
    %v1029 = vmul.f32 %v1025, %v129
    %v1030 = vmul.f32 %v1028, %v129
    %v1031 = vadd.f32 %v1029, 1e-05
    %v1032 = vadd.f32 %v1030, 1e-05
    %v1033 = vrsqrt.pop %v1031
    %v1034 = vrsqrt.pop %v1032
    %v1035 = vmul.f32 %v1019, %v1033
    %v1036 = vmul.f32 %v1020, %v1034
    %v1037 = vlaneseq
    %v1038 = vshrl.u32 %v1037, 7
    %v1039 = vsub.s32 0, %v1038
    %v1040 = vrot.slane %v120, %v1039
    %v1042 = vsel %vm122, %v1035, 0
    %v1045 = vsel %vm122, %v1036, 0
    %1047 = vmatprep.subr.mxu0 0.0
    %1048 = vmatpush1.msra.mxu0 %v72
    %1049 = vmatprep.subr.mxu0 0.0
    %1050 = vmatpush1.msra.mxu0 %v73
    %1051 = vmatprep.subr.mxu0 0.0
    %1052 = vmatpush1.msra.mxu0 %v74
    %1053 = vmatprep.subr.mxu0 0.0
    %1054 = vmatpush1.msra.mxu0 %v75
    %1055 = vmatprep.subr.mxu0 0.0
    %1056 = vmatpush1.msra.mxu0 0.0
    %1057 = vmatprep.subr.mxu0 0.0
    %1058 = vmatpush1.msra.mxu0 0.0
    %1059 = vmatprep.subr.mxu0 0.0
    %1060 = vmatpush1.msra.mxu0 0.0
    %1061 = vmatprep.subr.mxu0 0.0
    %1062 = vmatpush1.msra.mxu0 0.0
    %1063 = vmatprep.subr.mxu0 0.0
    %1064 = vmatpush1.msra.mxu0 0.0
    %1065 = vmatprep.subr.mxu0 0.0
    %1066 = vmatpush1.msra.mxu0 0.0
    %1067 = vmatprep.subr.mxu0 0.0
    %1068 = vmatpush1.msra.mxu0 0.0
    %1069 = vmatprep.subr.mxu0 0.0
    %1070 = vmatpush1.msra.mxu0 0.0
    %1071 = vmatprep.subr.mxu0 0.0
    %1072 = vmatpush1.msra.mxu0 0.0
    %1073 = vmatprep.subr.mxu0 0.0
    %1074 = vmatpush1.msra.mxu0 0.0
    %1075 = vmatprep.subr.mxu0 0.0
    %1076 = vmatpush1.msra.mxu0 0.0
    %1077 = vmatprep.subr.mxu0 0.0
    %1078 = vmatpush1.msra.mxu0 0.0
    %1079 = vmatprep.subr.mxu0 0.0
    %1080 = vmatpush1.msra.mxu0 0.0
    %1081 = vmatprep.subr.mxu0 0.0
    %1082 = vmatpush1.msra.mxu0 0.0
    %1083 = vmatprep.subr.mxu0 0.0
    %1084 = vmatpush1.msra.mxu0 0.0
    %1085 = vmatprep.subr.mxu0 0.0
    %1086 = vmatpush1.msra.mxu0 0.0
    %1087 = vmatprep.subr.mxu0 0.0
    %1088 = vmatpush1.msra.mxu0 0.0
    %1089 = vmatprep.subr.mxu0 0.0
    %1090 = vmatpush1.msra.mxu0 0.0
    %1091 = vmatprep.subr.mxu0 0.0
    %1092 = vmatpush1.msra.mxu0 0.0
    %1093 = vmatprep.subr.mxu0 0.0
    %1094 = vmatpush1.msra.mxu0 0.0
    %1095 = vmatprep.subr.mxu0 0.0
    %1096 = vmatpush1.msra.mxu0 0.0
    %1097 = vmatprep.subr.mxu0 0.0
    %1098 = vmatpush1.msra.mxu0 0.0
    %1099 = vmatprep.subr.mxu0 0.0
    %1100 = vmatpush1.msra.mxu0 0.0
    %1101 = vmatprep.subr.mxu0 0.0
    %1102 = vmatpush1.msra.mxu0 0.0
    %1103 = vmatprep.subr.mxu0 0.0
    %1104 = vmatpush1.msra.mxu0 0.0
    %1105 = vmatprep.subr.mxu0 0.0
    %1106 = vmatpush1.msra.mxu0 0.0
    %1107 = vmatprep.subr.mxu0 0.0
    %1108 = vmatpush1.msra.mxu0 0.0
    %1109 = vmatprep.subr.mxu0 0.0
    %1110 = vmatpush1.msra.mxu0 0.0
    %1111 = vmatprep.mubr.f32.mxu0 0.0
    %1112 = vmatmul.mubr.f32.gmra.mrb[0].mxu0 %v1042
    %v1113 = vpop.f32.mrb[0].mxu0
    %v1114 = vadd.f32 %v1040, %v1113
    %v1115 = vpop.f32.mrb[0].mxu0
    %1116 = vmatprep.mubr.f32.mxu0 0.0
    %1117 = vmatmul.mubr.f32.gmra.mrb[0].mxu0 %v1045
    %v1118 = vpop.f32.mrb[0].mxu0
    %v1119 = vadd.f32 %v1040, %v1118
    %v1120 = vpop.f32.mrb[0].mxu0
    %1121 = vdwg.mxu0
    %v1122 = vmax.f32 %v1114, 0.0
    %v1123 = vmax.f32 %v1119, 0.0
    %v1124 = vlaneseq
    %v1125 = vshrl.u32 %v1124, 7
    %v1126 = vsub.s32 0, %v1125
    %v1127 = vrot.slane %v121, %v1126
    %v1129 = vsel %vm608, %v1122, 0
    %v1132 = vsel %vm608, %v1123, 0
    %1134 = vmatprep.subr.mxu0 0.0
    %1135 = vmatpush1.msra.mxu0 %v76
    %1136 = vmatprep.subr.mxu0 0.0
    %1137 = vmatpush1.msra.mxu0 %v77
    %1138 = vmatprep.subr.mxu0 0.0
    %1139 = vmatpush1.msra.mxu0 %v78
    %1140 = vmatprep.subr.mxu0 0.0
    %1141 = vmatpush1.msra.mxu0 %v79
    %1142 = vmatprep.subr.mxu0 0.0
    %1143 = vmatpush1.msra.mxu0 %v80
    %1144 = vmatprep.subr.mxu0 0.0
    %1145 = vmatpush1.msra.mxu0 %v81
    %1146 = vmatprep.subr.mxu0 0.0
    %1147 = vmatpush1.msra.mxu0 %v82
    %1148 = vmatprep.subr.mxu0 0.0
    %1149 = vmatpush1.msra.mxu0 %v83
    %1150 = vmatprep.subr.mxu0 0.0
    %1151 = vmatpush1.msra.mxu0 0.0
    %1152 = vmatprep.subr.mxu0 0.0
    %1153 = vmatpush1.msra.mxu0 0.0
    %1154 = vmatprep.subr.mxu0 0.0
    %1155 = vmatpush1.msra.mxu0 0.0
    %1156 = vmatprep.subr.mxu0 0.0
    %1157 = vmatpush1.msra.mxu0 0.0
    %1158 = vmatprep.subr.mxu0 0.0
    %1159 = vmatpush1.msra.mxu0 0.0
    %1160 = vmatprep.subr.mxu0 0.0
    %1161 = vmatpush1.msra.mxu0 0.0
    %1162 = vmatprep.subr.mxu0 0.0
    %1163 = vmatpush1.msra.mxu0 0.0
    %1164 = vmatprep.subr.mxu0 0.0
    %1165 = vmatpush1.msra.mxu0 0.0
    %1166 = vmatprep.subr.mxu0 0.0
    %1167 = vmatpush1.msra.mxu0 0.0
    %1168 = vmatprep.subr.mxu0 0.0
    %1169 = vmatpush1.msra.mxu0 0.0
    %1170 = vmatprep.subr.mxu0 0.0
    %1171 = vmatpush1.msra.mxu0 0.0
    %1172 = vmatprep.subr.mxu0 0.0
    %1173 = vmatpush1.msra.mxu0 0.0
    %1174 = vmatprep.subr.mxu0 0.0
    %1175 = vmatpush1.msra.mxu0 0.0
    %1176 = vmatprep.subr.mxu0 0.0
    %1177 = vmatpush1.msra.mxu0 0.0
    %1178 = vmatprep.subr.mxu0 0.0
    %1179 = vmatpush1.msra.mxu0 0.0
    %1180 = vmatprep.subr.mxu0 0.0
    %1181 = vmatpush1.msra.mxu0 0.0
    %1182 = vmatprep.subr.mxu0 0.0
    %1183 = vmatpush1.msra.mxu0 0.0
    %1184 = vmatprep.subr.mxu0 0.0
    %1185 = vmatpush1.msra.mxu0 0.0
    %1186 = vmatprep.subr.mxu0 0.0
    %1187 = vmatpush1.msra.mxu0 0.0
    %1188 = vmatprep.subr.mxu0 0.0
    %1189 = vmatpush1.msra.mxu0 0.0
    %1190 = vmatprep.subr.mxu0 0.0
    %1191 = vmatpush1.msra.mxu0 0.0
    %1192 = vmatprep.subr.mxu0 0.0
    %1193 = vmatpush1.msra.mxu0 0.0
    %1194 = vmatprep.subr.mxu0 0.0
    %1195 = vmatpush1.msra.mxu0 0.0
    %1196 = vmatprep.subr.mxu0 0.0
    %1197 = vmatpush1.msra.mxu0 0.0
    %1198 = vmatprep.mubr.f32.mxu0 0.0
    %1199 = vmatmul.mubr.f32.gmra.mrb[0].mxu0 %v1129
    %v1200 = vpop.f32.mrb[0].mxu0
    %v1201 = vadd.f32 %v1127, %v1200
    %v1202 = vpop.f32.mrb[0].mxu0
    %1203 = vmatprep.mubr.f32.mxu0 0.0
    %1204 = vmatmul.mubr.f32.gmra.mrb[0].mxu0 %v1132
    %v1205 = vpop.f32.mrb[0].mxu0
    %v1206 = vadd.f32 %v1127, %v1205
    %v1207 = vpop.f32.mrb[0].mxu0
    %1208 = vdwg.mxu0
    %v1209 = vadd.f32 %v1009, %v1201
    %v1210 = vadd.f32 %v1010, %v1206
    %1211 = vst.msk [vmem:[#allocation8] sm:$0xff] %vm122, %v1209
    %1212 = vst.msk [vmem:[#allocation8 + $0x8] sm:$0xff] %vm122, %v1210
    // Predicated region
    $region26: #{encoder_layer.1} parent=1 // pred_check
      _
    $region27: #{encoder_layer.1} parent=1 // pred_check_branch
      %1214 = sbr.rel (0) target = $region29
    $region28: #{encoder_layer.1} parent=1 // pred_region
      %s1216 = ssub.s32 256, 256
      %1217 = vsyncadd [#allocation4], %s1216
      %s1218 = sshll.u32 [#allocation8], 4
      %s1219 = int_to_ptr.vmem [resolvable:$true] %s1218
      %1224 = dma.vmem_to_hbm [thread:$0]  %s1219, 256, %s3, [#allocation4], 128, 128, 8
    $region29: #{encoder_layer.1} parent=1 // pred_fallthru
      _
    // Predicated region
    $region30: #{encoder_layer.1} parent=1 // pred_check
      _
    $region31: #{encoder_layer.1} parent=1 // pred_check_branch
      %1226 = sbr.rel (0) target = $region33
    $region32: #{encoder_layer.1} parent=1 // pred_region
      %1227 = dma.done [#allocation4], 256
    $region33: #{encoder_layer.1} parent=1 // pred_fallthru
      _
    %1228 = vsyncpa [#allocation3], 1
    %1229 = vsyncpa [#allocation6], 1
    %1230 = vsyncpa [#allocation4], 1

</llo_original>
